<compile_context>
chip_gen: v5e
topology: v5e:2x2
jax: 0.10.0
libtpu: 0.0.40
codegen_flags: <defaults>
</compile_context>

<pallas_src>
import jax
import jax.numpy as jnp
from jax.experimental import pallas as pl
from jax.experimental.pallas import tpu as pltpu


def _round_up(x, m):
    return -(-x // m) * m


def t2v_mlp_kernel(xt_ref, w_ref, b_ref, wfc_ref, a_ref, c_ref, o_ref):
    # xt:  (1, TB)   batch on the lane axis
    # w:   (Hs, 1)   Time2Vec sin weights as a column (zero-padded rows at the end)
    # b:   (Hs, 1)
    # wfc: (2, Hs)   fc1 weight restricted to the sin rows (zero-padded columns)
    # a:   (2, 1)    folded linear-row scale:  Wfc[:, H-1] * w0
    # c:   (2, 1)    folded linear-row offset: Wfc[:, H-1] * b0 + bfc
    # o:   (2, TB)
    x = xt_ref[...]                                     # (1, TB)
    # K=1 contraction == outer product -> pure VPU broadcast multiply (no MXU round trip).
    pre = w_ref[...] * x + b_ref[...]                   # (Hs, TB)
    h = jnp.sin(pre)                                    # (Hs, TB)  VALU polynomial (binding unit)
    # (2,Hs) @ (Hs,TB): lane-dense output, f32 accumulate on the MXU.
    out = jnp.dot(wfc_ref[...], h, preferred_element_type=jnp.float32)  # (2, TB)
    # Fused epilogue: folded w0 row + fc bias in the same vreg pass as the dot result.
    o_ref[...] = (out + a_ref[...] * x + c_ref[...]).astype(o_ref.dtype)


def model_forward(x, params, *, tb_max=32768, min_kernel_batch=1024):
    """x: (B, 1) float32. Returns (B, 2) float32 (matches the PyTorch module)."""
    B = x.shape[0]
    # Tiny batches: kernel launch + padding + single-step grid overhead dominates;
    # dispatch to the pure-JAX path (the __main__ test forces the kernel with =0).
    if B < min_kernel_batch:
        return reference_forward(x, params)

    w, b, w0, b0, wfc, bfc = (
        params["w"], params["b"], params["w0"], params["b0"],
        params["fc1_w"], params["fc1_b"],
    )
    H = w.shape[1] + 1            # hidden_dim
    h_sin = H - 1                 # number of sin rows
    hs = _round_up(max(h_sin, 1), 8)

    # --- fold the linear (w0) row into a (2,1) scale / offset epilogue ---
    wfc_last = wfc[:, h_sin:h_sin + 1]                           # (2, 1)
    a_col = wfc_last * w0[0, 0]                                  # (2, 1)
    c_col = wfc_last * b0[0, 0] + bfc.reshape(2, 1)              # (2, 1)

    # --- sin-row params as columns (hidden on the sublane axis), zero-padded to hs ---
    pad = hs - h_sin
    w_col = jnp.pad(w.reshape(h_sin, 1), ((0, pad), (0, 0)))     # (hs, 1)
    b_col = jnp.pad(b.reshape(h_sin, 1), ((0, pad), (0, 0)))     # (hs, 1)
    wfc_sin = jnp.pad(wfc[:, :h_sin], ((0, 0), (0, pad)))        # (2, hs) zero cols -> zero contrib

    # --- batch on the lane axis, tiled; >=2 steps when possible for v7x megacore ---
    lane = 128
    bp128 = _round_up(B, lane)
    tb_half = _round_up(-(-bp128 // 2), lane)
    TB = bp128 if bp128 <= lane else min(tb_max, tb_half)
    TB = max(TB, lane)
    Bp = _round_up(B, TB)
    xt = jnp.pad(x[:, 0], (0, Bp - B)).reshape(1, Bp)
    grid = (Bp // TB,)

    # Advisory cost hint so XLA schedules the surrounding pad/slice/transpose sensibly.
    flops = int(Bp) * (2 * hs + 4 * hs + 6)          # pre (mul+add) + dot MACs + epilogue
    transcendentals = int(Bp) * hs
    bytes_accessed = 4 * int(Bp) * 3 + 4 * (2 * hs + 2 * hs + 8)

    out_t = pl.pallas_call(
        t2v_mlp_kernel,
        out_shape=jax.ShapeDtypeStruct((2, Bp), jnp.float32),
        grid=grid,
        in_specs=[
            pl.BlockSpec((1, TB), lambda i: (0, i)),   # x tile (lane-dense)
            pl.BlockSpec((hs, 1), lambda i: (0, 0)),   # sin weights (column)
            pl.BlockSpec((hs, 1), lambda i: (0, 0)),   # sin bias (column)
            pl.BlockSpec((2, hs), lambda i: (0, 0)),   # fc1 weight (sin rows only)
            pl.BlockSpec((2, 1), lambda i: (0, 0)),    # folded linear-row scale
            pl.BlockSpec((2, 1), lambda i: (0, 0)),    # folded linear-row offset (incl. fc bias)
        ],
        out_specs=pl.BlockSpec((2, TB), lambda i: (0, i)),
        compiler_params=pltpu.CompilerParams(
            dimension_semantics=("parallel",),          # megacore-shard B on v7x
            vmem_limit_bytes=32 * 1024 * 1024,          # above v5e's 16 MiB scoped default
        ),
        cost_estimate=pl.CostEstimate(
            flops=flops,
            transcendentals=transcendentals,
            bytes_accessed=bytes_accessed,
        ),
    )(xt, w_col, b_col, wfc_sin, a_col, c_col)

    # The module contract is (B, 2); the in-kernel layout stays (2, TB) lane-dense and
    # the transpose is a cheap XLA pass over the 2-row output.
    return out_t[:, :B].T


def init_params(key, hidden_dim):
    in_features = 1
    ks = jax.random.split(key, 6)
    return {
        "w0": jax.random.normal(ks[0], (in_features, 1), jnp.float32),
        "b0": jax.random.normal(ks[1], (in_features, 1), jnp.float32),
        "w": jax.random.normal(ks[2], (in_features, hidden_dim - 1), jnp.float32),
        "b": jax.random.normal(ks[3], (in_features, hidden_dim - 1), jnp.float32),
        # nn.Linear(hidden_dim, 2): weight (2, hidden_dim), bias (2,)
        "fc1_w": jax.random.normal(ks[4], (2, hidden_dim), jnp.float32) * 0.1,
        "fc1_b": jax.random.normal(ks[5], (2,), jnp.float32) * 0.1,
    }


def reference_forward(x, params):
    v1 = jnp.sin(x @ params["w"] + params["b"])
    v2 = x @ params["w0"] + params["b0"].reshape(1, 1)
    h = jnp.concatenate([v1, v2], axis=1)
    return h @ params["fc1_w"].T + params["fc1_b"]


if __name__ == "__main__":
    key = jax.random.PRNGKey(0)
    k_p, k_x, k_x2 = jax.random.split(key, 3)

    hidden_dim = 32
    batch = 8

    params = init_params(k_p, hidden_dim)
    x = jax.random.normal(k_x, (batch, 1), jnp.float32)  # scalar time input per row

    # Force the Pallas path even at this tiny test batch.
    out = jax.block_until_ready(model_forward(x, params, min_kernel_batch=0))
    ref = reference_forward(x, params)
    assert out.shape == (batch, 2)
    assert jnp.allclose(out, ref, atol=1e-5, rtol=1e-5), "mismatch vs JAX reference"

    # Also exercise the multi-step grid / padded-batch path.
    x2 = jax.random.normal(k_x2, (300, 1), jnp.float32)
    out2 = jax.block_until_ready(model_forward(x2, params, min_kernel_batch=0))
    ref2 = reference_forward(x2, params)
    assert out2.shape == (300, 2)
    assert jnp.allclose(out2, ref2, atol=1e-5, rtol=1e-5), "mismatch vs JAX reference (B=300)"

    print("KERNEL_OK")
</pallas_src>

<mosaic_0001>
module attributes {stable_mosaic.version = 11 : i64} {
  func.func @t2v_mlp_kernel(%arg0: i32, %arg1: memref<1x128xf32, #tpu.memory_space<vmem>>, %arg2: memref<32x1xf32, #tpu.memory_space<vmem>>, %arg3: memref<32x1xf32, #tpu.memory_space<vmem>>, %arg4: memref<2x32xf32, #tpu.memory_space<vmem>>, %arg5: memref<2x1xf32, #tpu.memory_space<vmem>>, %arg6: memref<2x1xf32, #tpu.memory_space<vmem>>, %arg7: memref<2x128xf32, #tpu.memory_space<vmem>>) attributes {dimension_semantics = [#tpu.dimension_semantics<parallel>], iteration_bounds = array<i64: 1>, scalar_prefetch = 0 : i64, scratch_operands = 0 : i64, tpu.core_type = #tpu.core_type<tc>, window_params = [{transform_indices = @transform_0, window_bounds = array<i64: 1, 128>}, {pipeline_mode = #tpu.pipeline_mode<synchronous>, transform_indices = @transform_1, window_bounds = array<i64: 32, 1>}, {pipeline_mode = #tpu.pipeline_mode<synchronous>, transform_indices = @transform_2, window_bounds = array<i64: 32, 1>}, {pipeline_mode = #tpu.pipeline_mode<synchronous>, transform_indices = @transform_3, window_bounds = array<i64: 2, 32>}, {pipeline_mode = #tpu.pipeline_mode<synchronous>, transform_indices = @transform_4, window_bounds = array<i64: 2, 1>}, {pipeline_mode = #tpu.pipeline_mode<synchronous>, transform_indices = @transform_5, window_bounds = array<i64: 2, 1>}, {transform_indices = @transform_6, window_bounds = array<i64: 2, 128>}]} {
    %c0 = arith.constant 0 : index
    %c0_0 = arith.constant 0 : index
    %0 = vector.load %arg1[%c0, %c0_0] : memref<1x128xf32, #tpu.memory_space<vmem>>, vector<1x128xf32>
    %c0_1 = arith.constant 0 : index
    %c0_2 = arith.constant 0 : index
    %1 = vector.load %arg2[%c0_1, %c0_2] : memref<32x1xf32, #tpu.memory_space<vmem>>, vector<32x1xf32>
    %2 = vector.broadcast %1 : vector<32x1xf32> to vector<32x128xf32>
    %3 = vector.broadcast %0 : vector<1x128xf32> to vector<32x128xf32>
    %4 = arith.mulf %2, %3 : vector<32x128xf32>
    %c0_3 = arith.constant 0 : index
    %c0_4 = arith.constant 0 : index
    %5 = vector.load %arg3[%c0_3, %c0_4] : memref<32x1xf32, #tpu.memory_space<vmem>>, vector<32x1xf32>
    %6 = vector.broadcast %5 : vector<32x1xf32> to vector<32x128xf32>
    %7 = arith.addf %4, %6 : vector<32x128xf32>
    %8 = math.sin %7 : vector<32x128xf32>
    %c0_5 = arith.constant 0 : index
    %c0_6 = arith.constant 0 : index
    %9 = vector.load %arg4[%c0_5, %c0_6] : memref<2x32xf32, #tpu.memory_space<vmem>>, vector<2x32xf32>
    %cst = arith.constant dense<0.000000e+00> : vector<2x128xf32>
    %10 = tpu.matmul %9, %8, %cst {dimension_numbers = #tpu.dot_dimension_numbers<[1], [0], [0], [1], [0, 0, 1, 1], [], []>} : vector<2x32xf32>, vector<32x128xf32>, vector<2x128xf32> -> vector<2x128xf32>
    %c0_7 = arith.constant 0 : index
    %c0_8 = arith.constant 0 : index
    %11 = vector.load %arg5[%c0_7, %c0_8] : memref<2x1xf32, #tpu.memory_space<vmem>>, vector<2x1xf32>
    %12 = vector.broadcast %11 : vector<2x1xf32> to vector<2x128xf32>
    %13 = vector.broadcast %0 : vector<1x128xf32> to vector<2x128xf32>
    %14 = arith.mulf %12, %13 : vector<2x128xf32>
    %15 = arith.addf %10, %14 : vector<2x128xf32>
    %c0_9 = arith.constant 0 : index
    %c0_10 = arith.constant 0 : index
    %16 = vector.load %arg6[%c0_9, %c0_10] : memref<2x1xf32, #tpu.memory_space<vmem>>, vector<2x1xf32>
    %17 = vector.broadcast %16 : vector<2x1xf32> to vector<2x128xf32>
    %18 = arith.addf %15, %17 : vector<2x128xf32>
    %c0_11 = arith.constant 0 : index
    %c0_12 = arith.constant 0 : index
    %19 = vector.load %arg7[%c0_11, %c0_12] : memref<2x128xf32, #tpu.memory_space<vmem>>, vector<2x128xf32>
    tpu.vector_store %arg7[%c0_11, %c0_12], %18 {strides = array<i32>} : memref<2x128xf32, #tpu.memory_space<vmem>>, vector<2x128xf32>,
    return
  }
  func.func @transform_0(%arg0: i32) -> (i32, i32) {
    %c0_i32 = arith.constant 0 : i32
    %c0_i32_0 = arith.constant 0 : i32
    return %c0_i32, %arg0 : i32, i32
  }
  func.func @transform_1(%arg0: i32) -> (i32, i32) {
    %c0_i32 = arith.constant 0 : i32
    %c0_i32_0 = arith.constant 0 : i32
    %c0_i32_1 = arith.constant 0 : i32
    return %c0_i32, %c0_i32_0 : i32, i32
  }
  func.func @transform_2(%arg0: i32) -> (i32, i32) {
    %c0_i32 = arith.constant 0 : i32
    %c0_i32_0 = arith.constant 0 : i32
    %c0_i32_1 = arith.constant 0 : i32
    return %c0_i32, %c0_i32_0 : i32, i32
  }
  func.func @transform_3(%arg0: i32) -> (i32, i32) {
    %c0_i32 = arith.constant 0 : i32
    %c0_i32_0 = arith.constant 0 : i32
    %c0_i32_1 = arith.constant 0 : i32
    return %c0_i32, %c0_i32_0 : i32, i32
  }
  func.func @transform_4(%arg0: i32) -> (i32, i32) {
    %c0_i32 = arith.constant 0 : i32
    %c0_i32_0 = arith.constant 0 : i32
    %c0_i32_1 = arith.constant 0 : i32
    return %c0_i32, %c0_i32_0 : i32, i32
  }
  func.func @transform_5(%arg0: i32) -> (i32, i32) {
    %c0_i32 = arith.constant 0 : i32
    %c0_i32_0 = arith.constant 0 : i32
    %c0_i32_1 = arith.constant 0 : i32
    return %c0_i32, %c0_i32_0 : i32, i32
  }
  func.func @transform_6(%arg0: i32) -> (i32, i32) {
    %c0_i32 = arith.constant 0 : i32
    %c0_i32_0 = arith.constant 0 : i32
    return %c0_i32, %arg0 : i32, i32
  }
}

</mosaic_0001>

<llo_original>
// kernel: tpu_custom_call.1
$region0: #{tpu_custom_call.1}
  #allocation0 [shape = 'u32[]', space=smem, size = 0x4, offset = 0x4, fixed_abs, tag = 'smem constant byte address 0x4 - core index']
  #allocation1 [shape = 'u32[72,128]{1,0:T(1,128)}', space=vmem, size = 0x9000, scoped, tag = 'internal scratch']
  %s0 = inlined_call_operand.vmem [shape: f32[1,128], index: 0, kind: input, shape index: {}]
  %s1 = inlined_call_operand.vmem [shape: f32[32,1], index: 1, kind: input, shape index: {}]
  %s2 = inlined_call_operand.vmem [shape: f32[32,1], index: 2, kind: input, shape index: {}]
  %s3 = inlined_call_operand.vmem [shape: f32[2,32], index: 3, kind: input, shape index: {}]
  %s4 = inlined_call_operand.vmem [shape: f32[2,1], index: 4, kind: input, shape index: {}]
  %s5 = inlined_call_operand.vmem [shape: f32[2,1], index: 5, kind: input, shape index: {}]
  %s6 = inlined_call_operand.hbm [shape: f32[2,128], index: 6, kind: output, shape index: {}]
  %s7 = sld [smem:[#allocation0]]
  $region34: #{tpu_custom_call.1} parent=0
    _
  %s9 = ssub.s32 1, %s7
  %s10 = scalar_select 0, %s9, %s7
  $region1: #{tpu_custom_call.1} parent=0
    #allocation2 [shape = 'u8[1024]{0}', space=vmem, size = 0x400, scoped, tag = 'output window, operand 0, single buffered']
    #allocation3 [shape = 's32[1]{0}', space=sflag, size = 0x4, scoped, tag = 'scoped memory for tpu_custom_call.1']
    %11 = vsyncpa [#allocation3], 0
    // Predicated region
    $region2: #{tpu_custom_call.1} parent=1 // pred_check
      _
    $region3: #{tpu_custom_call.1} parent=1 // pred_check_branch
      %13 = sbr.rel (0) target = $region5
    $region4: #{tpu_custom_call.1} parent=1 // pred_region
      _
    $region5: #{tpu_custom_call.1} parent=1 // pred_fallthru
      _
    // Predicated region
    $region6: #{tpu_custom_call.1} parent=1 // pred_check
      _
    $region7: #{tpu_custom_call.1} parent=1 // pred_check_branch
      %15 = sbr.rel (0) target = $region9
    $region8: #{tpu_custom_call.1} parent=1 // pred_region
      _
    $region9: #{tpu_custom_call.1} parent=1 // pred_fallthru
      _
    // Predicated region
    $region10: #{tpu_custom_call.1} parent=1 // pred_check
      _
    $region11: #{tpu_custom_call.1} parent=1 // pred_check_branch
      %17 = sbr.rel (0) target = $region13
    $region12: #{tpu_custom_call.1} parent=1 // pred_region
      _
    $region13: #{tpu_custom_call.1} parent=1 // pred_fallthru
      _
    // Predicated region
    $region14: #{tpu_custom_call.1} parent=1 // pred_check
      _
    $region15: #{tpu_custom_call.1} parent=1 // pred_check_branch
      %19 = sbr.rel (0) target = $region17
    $region16: #{tpu_custom_call.1} parent=1 // pred_region
      _
    $region17: #{tpu_custom_call.1} parent=1 // pred_fallthru
      _
    // Predicated region
    $region18: #{tpu_custom_call.1} parent=1 // pred_check
      _
    $region19: #{tpu_custom_call.1} parent=1 // pred_check_branch
      %21 = sbr.rel (0) target = $region21
    $region20: #{tpu_custom_call.1} parent=1 // pred_region
      _
    $region21: #{tpu_custom_call.1} parent=1 // pred_fallthru
      _
    // Predicated region
    $region22: #{tpu_custom_call.1} parent=1 // pred_check
      _
    $region23: #{tpu_custom_call.1} parent=1 // pred_check_branch
      %23 = sbr.rel (0) target = $region25
    $region24: #{tpu_custom_call.1} parent=1 // pred_region
      _
    $region25: #{tpu_custom_call.1} parent=1 // pred_fallthru
      _
    %v24 = vld [vmem:[%s0] sm:$0x1]
    %v25 = vld [vmem:[%s1] sm:$0xff]
    %v26 = vld [vmem:[%s1 + $0x8] sm:$0xff]
    %v27 = vld [vmem:[%s1 + $0x10] sm:$0xff]
    %v28 = vld [vmem:[%s1 + $0x18] sm:$0xff]
    %30 = vset.pattern.permute.xlu0 0
    %31 = vperm.xlu0 %30, %v25
    %v32 = vpop.permute.xlu0 %31
    %35 = vset.pattern.permute.xlu0 0
    %36 = vperm.xlu0 %35, %v26
    %v37 = vpop.permute.xlu0 %36
    %40 = vset.pattern.permute.xlu0 0
    %41 = vperm.xlu0 %40, %v27
    %v42 = vpop.permute.xlu0 %41
    %45 = vset.pattern.permute.xlu0 0
    %46 = vperm.xlu0 %45, %v28
    %v47 = vpop.permute.xlu0 %46
    %v50 = vperm.slane %v24, 0
    %v52 = vmul.f32 %v32, %v50
    %v53 = vmul.f32 %v37, %v50
    %v54 = vmul.f32 %v42, %v50
    %v55 = vmul.f32 %v47, %v50
    %v56 = vld [vmem:[%s2] sm:$0xff]
    %v57 = vld [vmem:[%s2 + $0x8] sm:$0xff]
    %v58 = vld [vmem:[%s2 + $0x10] sm:$0xff]
    %v59 = vld [vmem:[%s2 + $0x18] sm:$0xff]
    %61 = vset.pattern.permute.xlu0 0
    %62 = vperm.xlu0 %61, %v56
    %v63 = vpop.permute.xlu0 %62
    %66 = vset.pattern.permute.xlu0 0
    %67 = vperm.xlu0 %66, %v57
    %v68 = vpop.permute.xlu0 %67
    %71 = vset.pattern.permute.xlu0 0
    %72 = vperm.xlu0 %71, %v58
    %v73 = vpop.permute.xlu0 %72
    %76 = vset.pattern.permute.xlu0 0
    %77 = vperm.xlu0 %76, %v59
    %v78 = vpop.permute.xlu0 %77
    %v80 = vadd.f32 %v52, %v63
    %v81 = vadd.f32 %v53, %v68
    %v82 = vadd.f32 %v54, %v73
    %v83 = vadd.f32 %v55, %v78
    %v84 = vand.u32 2147483647, %v80
    %vm85 = vcmp.le.f32.partialorder %v84, 0.7853982
    %vm86 = vcmp.lt.s32.totalorder %v80, 0
    %v87 = vand.u32 %v80, 2139095040
    %v88 = vshrl.u32 %v87, 23
    %v89 = vsub.s32 %v88, 127
    %v90 = vand.u32 2147483647, %v80
    %v91 = vand.u32 %v90, 8388607
    %v92 = vor.u32 %v91, 8388608
    %v93 = vsub.s32 0, %v92
    %v94 = vadd.s32 %v89, 1
    %vm95 = vcmp.gt.s32.totalorder %v94, 0
    %v96 = vsel %vm95, %v94, 0
    %v97 = vshrl.u32 %v96, 5
    %v98 = vand.u32 %v96, 31
    %v99 = vsub.s32 32, %v98
    %v100 = vshrl.u32 683565275, %v99
    %v101 = vshll.u32 683565275, %v98
    %v102 = vshrl.u32 2475754826, %v99
    %v103 = vor.u32 %v101, %v102
    %v104 = vshll.u32 2475754826, %v98
    %v105 = vshrl.u32 2131351028, %v99
    %v106 = vor.u32 %v104, %v105
    %v107 = vshll.u32 2131351028, %v98
    %v108 = vshrl.u32 2102212464, %v99
    %v109 = vor.u32 %v107, %v108
    %v110 = vshll.u32 2102212464, %v98
    %v111 = vshrl.u32 920167782, %v99
    %v112 = vor.u32 %v110, %v111
    %v113 = vshll.u32 920167782, %v98
    %v114 = vshrl.u32 1326507024, %v99
    %v115 = vor.u32 %v113, %v114
    %vm116 = vcmp.lt.s32.totalorder %v97, 1
    %vm117 = vcmp.lt.s32.totalorder %v97, 2
    %vm118 = vcmp.lt.s32.totalorder %v97, 3
    %vm119 = vcmp.lt.s32.totalorder %v97, 4
    %v120 = vsel %vm116, %v100, %v103
    %v121 = vsel %vm119, %v109, 2102212464
    %v122 = vsel %vm118, %v106, %v121
    %v123 = vsel %vm117, %v120, %v122
    %v124 = vsel %vm116, %v103, %v106
    %v125 = vsel %vm119, %v112, 920167782
    %v126 = vsel %vm118, %v109, %v125
    %v127 = vsel %vm117, %v124, %v126
    %v128 = vsel %vm116, %v106, %v109
    %v129 = vsel %vm119, %v115, 1326507024
    %v130 = vsel %vm118, %v112, %v129
    %v131 = vsel %vm117, %v128, %v130
    %v132 = vshll.u32 %v92, 8
    %v133 = vand.u32 %v132, 65535
    %v134 = vshrl.u32 %v132, 16
    %v135 = vand.u32 %v131, 65535
    %v136 = vshrl.u32 %v131, 16
    %v137 = vmul.u32 %v133, %v135
    %v138 = vmul.u32 %v133, %v136
    %v139 = vmul.u32 %v134, %v135
    %v140 = vmul.u32 %v134, %v136
    %v141 = vshll.u32 %v138, 16
    %v142 = vshrl.u32 %v138, 16
    %v143 = vshll.u32 %v139, 16
    %v144 = vshrl.u32 %v139, 16
    %vm145 = vc.u32 %v137, %v141
    %v146 = vsel %vm145, 1, 0
    %v147 = vadd.s32 %v137, %v141
    %v148 = vadd.s32 %v140, %v146
    %vm149 = vc.u32 %v147, %v143
    %v150 = vsel %vm149, 1, 0
    %v151 = vadd.s32 %v147, %v143
    %v152 = vadd.s32 %v148, %v150
    %v153 = vadd.s32 %v152, %v142
    %v154 = vadd.s32 %v153, %v144
    %v155 = vand.u32 %v132, 65535
    %v156 = vshrl.u32 %v132, 16
    %v157 = vand.u32 %v127, 65535
    %v158 = vshrl.u32 %v127, 16
    %v159 = vmul.u32 %v155, %v157
    %v160 = vmul.u32 %v155, %v158
    %v161 = vmul.u32 %v156, %v157
    %v162 = vmul.u32 %v156, %v158
    %v163 = vshll.u32 %v160, 16
    %v164 = vshrl.u32 %v160, 16
    %v165 = vshll.u32 %v161, 16
    %v166 = vshrl.u32 %v161, 16
    %vm167 = vc.u32 %v159, %v163
    %v168 = vsel %vm167, 1, 0
    %v169 = vadd.s32 %v159, %v163
    %v170 = vadd.s32 %v162, %v168
    %vm171 = vc.u32 %v169, %v165
    %v172 = vsel %vm171, 1, 0
    %v173 = vadd.s32 %v169, %v165
    %v174 = vadd.s32 %v170, %v172
    %v175 = vadd.s32 %v174, %v164
    %v176 = vadd.s32 %v175, %v166
    %v177 = vmul.u32 %v132, %v123
    %v178 = vadd.s32 %v154, %v173
    %vm179 = vc.u32 %v154, %v173
    %v180 = vadd.s32 %v176, 1
    %v181 = vsel %vm179, %v180, %v176
    %v182 = vadd.s32 %v177, %v181
    %v183 = vadd.s32 %v182, 536870912
    %v184 = vshrl.u32 %v183, 30
    %v185 = vshll.u32 %v184, 30
    %v186 = vsub.s32 %v182, %v185
    %vm187 = vcmp.lt.s32.totalorder %v186, 0
    %v188 = vsub.s32 0, %v186
    %v189 = vsel %vm187, %v188, %v186
    %v190 = vclz %v189
    %v191 = vsub.s32 %v190, 2
    %vm192 = vcmp.gt.s32.totalorder 0, %v191
    %v193 = vsel %vm192, 0, %v191
    %v194 = vsub.s32 32, %v193
    %v195 = vshll.u32 %v186, %v193
    %v196 = vshrl.u32 %v178, %v194
    %v197 = vor.u32 %v195, %v196
    %v198 = vsub.s32 4294967266, %v193
    %v199 = vadd.s32 %v198, 127
    %v200 = vshll.u32 %v199, 23
    %v201 = vor.u32 4788187, %v200
    %v202 = vand.u32 2147483647, %v201
    %v204 = vcvt.s32.f32 %v197
    %v205 = vmul.f32 %v204, %v202
    %v206 = vxor.u32 %v205, 2147483648
    %v207 = vsel %vm86, %v206, %v205
    %v208 = vsub.s32 4, %v184
    %v209 = vsel %vm86, %v208, %v184
    %v210 = vsel %vm85, %v80, %v207
    %v211 = vsel %vm85, 0, %v209
    %v212 = vmul.f32 %v210, %v210
    %v213 = vmul.f32 %v212, -0.001358992
    %v214 = vadd.f32 %v213, 0.041655596
    %v215 = vmul.f32 %v212, %v214
    %v216 = vadd.f32 %v215, -0.4999988
    %v217 = vmul.f32 %v212, %v216
    %v218 = vadd.f32 1.0, %v217
    %v219 = vmul.f32 %v210, %v210
    %v220 = vmul.f32 %v219, -0.00019511016
    %v221 = vadd.f32 %v220, 0.008332121
    %v222 = vmul.f32 %v219, %v221
    %v223 = vadd.f32 %v222, -0.16666654
    %v224 = vmul.f32 %v219, %v223
    %v225 = vadd.f32 %v224, 1.0
    %v226 = vmul.f32 %v225, %v210
    %vm227 = vweird.f32 %v80
    %v228 = vadd.s32 %v211, 3
    %v229 = vand.u32 %v228, 3
    %vm230 = vcmp.lt.s32.totalorder %v229, 2
    %vm231 = vcmp.eq.s32.totalorder %v229, 0
    %v232 = vxor.u32 %v226, 2147483648
    %v233 = vsel %vm231, %v218, %v232
    %vm234 = vcmp.eq.s32.totalorder %v229, 2
    %v235 = vxor.u32 %v218, 2147483648
    %v236 = vsel %vm234, %v235, %v226
    %v237 = vsel %vm230, %v233, %v236
    %v238 = vsel %vm227, nan, %v237
    %v239 = vand.u32 2147483647, %v81
    %vm240 = vcmp.le.f32.partialorder %v239, 0.7853982
    %vm241 = vcmp.lt.s32.totalorder %v81, 0
    %v242 = vand.u32 %v81, 2139095040
    %v243 = vshrl.u32 %v242, 23
    %v244 = vsub.s32 %v243, 127
    %v245 = vand.u32 2147483647, %v81
    %v246 = vand.u32 %v245, 8388607
    %v247 = vor.u32 %v246, 8388608
    %v248 = vsub.s32 0, %v247
    %v249 = vadd.s32 %v244, 1
    %vm250 = vcmp.gt.s32.totalorder %v249, 0
    %v251 = vsel %vm250, %v249, 0
    %v252 = vshrl.u32 %v251, 5
    %v253 = vand.u32 %v251, 31
    %v254 = vsub.s32 32, %v253
    %v255 = vshrl.u32 683565275, %v254
    %v256 = vshll.u32 683565275, %v253
    %v257 = vshrl.u32 2475754826, %v254
    %v258 = vor.u32 %v256, %v257
    %v259 = vshll.u32 2475754826, %v253
    %v260 = vshrl.u32 2131351028, %v254
    %v261 = vor.u32 %v259, %v260
    %v262 = vshll.u32 2131351028, %v253
    %v263 = vshrl.u32 2102212464, %v254
    %v264 = vor.u32 %v262, %v263
    %v265 = vshll.u32 2102212464, %v253
    %v266 = vshrl.u32 920167782, %v254
    %v267 = vor.u32 %v265, %v266
    %v268 = vshll.u32 920167782, %v253
    %v269 = vshrl.u32 1326507024, %v254
    %v270 = vor.u32 %v268, %v269
    %vm271 = vcmp.lt.s32.totalorder %v252, 1
    %vm272 = vcmp.lt.s32.totalorder %v252, 2
    %vm273 = vcmp.lt.s32.totalorder %v252, 3
    %vm274 = vcmp.lt.s32.totalorder %v252, 4
    %v275 = vsel %vm271, %v255, %v258
    %v276 = vsel %vm274, %v264, 2102212464
    %v277 = vsel %vm273, %v261, %v276
    %v278 = vsel %vm272, %v275, %v277
    %v279 = vsel %vm271, %v258, %v261
    %v280 = vsel %vm274, %v267, 920167782
    %v281 = vsel %vm273, %v264, %v280
    %v282 = vsel %vm272, %v279, %v281
    %v283 = vsel %vm271, %v261, %v264
    %v284 = vsel %vm274, %v270, 1326507024
    %v285 = vsel %vm273, %v267, %v284
    %v286 = vsel %vm272, %v283, %v285
    %v287 = vshll.u32 %v247, 8
    %v288 = vand.u32 %v287, 65535
    %v289 = vshrl.u32 %v287, 16
    %v290 = vand.u32 %v286, 65535
    %v291 = vshrl.u32 %v286, 16
    %v292 = vmul.u32 %v288, %v290
    %v293 = vmul.u32 %v288, %v291
    %v294 = vmul.u32 %v289, %v290
    %v295 = vmul.u32 %v289, %v291
    %v296 = vshll.u32 %v293, 16
    %v297 = vshrl.u32 %v293, 16
    %v298 = vshll.u32 %v294, 16
    %v299 = vshrl.u32 %v294, 16
    %vm300 = vc.u32 %v292, %v296
    %v301 = vsel %vm300, 1, 0
    %v302 = vadd.s32 %v292, %v296
    %v303 = vadd.s32 %v295, %v301
    %vm304 = vc.u32 %v302, %v298
    %v305 = vsel %vm304, 1, 0
    %v306 = vadd.s32 %v302, %v298
    %v307 = vadd.s32 %v303, %v305
    %v308 = vadd.s32 %v307, %v297
    %v309 = vadd.s32 %v308, %v299
    %v310 = vand.u32 %v287, 65535
    %v311 = vshrl.u32 %v287, 16
    %v312 = vand.u32 %v282, 65535
    %v313 = vshrl.u32 %v282, 16
    %v314 = vmul.u32 %v310, %v312
    %v315 = vmul.u32 %v310, %v313
    %v316 = vmul.u32 %v311, %v312
    %v317 = vmul.u32 %v311, %v313
    %v318 = vshll.u32 %v315, 16
    %v319 = vshrl.u32 %v315, 16
    %v320 = vshll.u32 %v316, 16
    %v321 = vshrl.u32 %v316, 16
    %vm322 = vc.u32 %v314, %v318
    %v323 = vsel %vm322, 1, 0
    %v324 = vadd.s32 %v314, %v318
    %v325 = vadd.s32 %v317, %v323
    %vm326 = vc.u32 %v324, %v320
    %v327 = vsel %vm326, 1, 0
    %v328 = vadd.s32 %v324, %v320
    %v329 = vadd.s32 %v325, %v327
    %v330 = vadd.s32 %v329, %v319
    %v331 = vadd.s32 %v330, %v321
    %v332 = vmul.u32 %v287, %v278
    %v333 = vadd.s32 %v309, %v328
    %vm334 = vc.u32 %v309, %v328
    %v335 = vadd.s32 %v331, 1
    %v336 = vsel %vm334, %v335, %v331
    %v337 = vadd.s32 %v332, %v336
    %v338 = vadd.s32 %v337, 536870912
    %v339 = vshrl.u32 %v338, 30
    %v340 = vshll.u32 %v339, 30
    %v341 = vsub.s32 %v337, %v340
    %vm342 = vcmp.lt.s32.totalorder %v341, 0
    %v343 = vsub.s32 0, %v341
    %v344 = vsel %vm342, %v343, %v341
    %v345 = vclz %v344
    %v346 = vsub.s32 %v345, 2
    %vm347 = vcmp.gt.s32.totalorder 0, %v346
    %v348 = vsel %vm347, 0, %v346
    %v349 = vsub.s32 32, %v348
    %v350 = vshll.u32 %v341, %v348
    %v351 = vshrl.u32 %v333, %v349
    %v352 = vor.u32 %v350, %v351
    %v353 = vsub.s32 4294967266, %v348
    %v354 = vadd.s32 %v353, 127
    %v355 = vshll.u32 %v354, 23
    %v356 = vor.u32 4788187, %v355
    %v357 = vand.u32 2147483647, %v356
    %v359 = vcvt.s32.f32 %v352
    %v360 = vmul.f32 %v359, %v357
    %v361 = vxor.u32 %v360, 2147483648
    %v362 = vsel %vm241, %v361, %v360
    %v363 = vsub.s32 4, %v339
    %v364 = vsel %vm241, %v363, %v339
    %v365 = vsel %vm240, %v81, %v362
    %v366 = vsel %vm240, 0, %v364
    %v367 = vmul.f32 %v365, %v365
    %v368 = vmul.f32 %v367, -0.001358992
    %v369 = vadd.f32 %v368, 0.041655596
    %v370 = vmul.f32 %v367, %v369
    %v371 = vadd.f32 %v370, -0.4999988
    %v372 = vmul.f32 %v367, %v371
    %v373 = vadd.f32 1.0, %v372
    %v374 = vmul.f32 %v365, %v365
    %v375 = vmul.f32 %v374, -0.00019511016
    %v376 = vadd.f32 %v375, 0.008332121
    %v377 = vmul.f32 %v374, %v376
    %v378 = vadd.f32 %v377, -0.16666654
    %v379 = vmul.f32 %v374, %v378
    %v380 = vadd.f32 %v379, 1.0
    %v381 = vmul.f32 %v380, %v365
    %vm382 = vweird.f32 %v81
    %v383 = vadd.s32 %v366, 3
    %v384 = vand.u32 %v383, 3
    %vm385 = vcmp.lt.s32.totalorder %v384, 2
    %vm386 = vcmp.eq.s32.totalorder %v384, 0
    %v387 = vxor.u32 %v381, 2147483648
    %v388 = vsel %vm386, %v373, %v387
    %vm389 = vcmp.eq.s32.totalorder %v384, 2
    %v390 = vxor.u32 %v373, 2147483648
    %v391 = vsel %vm389, %v390, %v381
    %v392 = vsel %vm385, %v388, %v391
    %v393 = vsel %vm382, nan, %v392
    %v394 = vand.u32 2147483647, %v82
    %vm395 = vcmp.le.f32.partialorder %v394, 0.7853982
    %vm396 = vcmp.lt.s32.totalorder %v82, 0
    %v397 = vand.u32 %v82, 2139095040
    %v398 = vshrl.u32 %v397, 23
    %v399 = vsub.s32 %v398, 127
    %v400 = vand.u32 2147483647, %v82
    %v401 = vand.u32 %v400, 8388607
    %v402 = vor.u32 %v401, 8388608
    %v403 = vsub.s32 0, %v402
    %v404 = vadd.s32 %v399, 1
    %vm405 = vcmp.gt.s32.totalorder %v404, 0
    %v406 = vsel %vm405, %v404, 0
    %v407 = vshrl.u32 %v406, 5
    %v408 = vand.u32 %v406, 31
    %v409 = vsub.s32 32, %v408
    %v410 = vshrl.u32 683565275, %v409
    %v411 = vshll.u32 683565275, %v408
    %v412 = vshrl.u32 2475754826, %v409
    %v413 = vor.u32 %v411, %v412
    %v414 = vshll.u32 2475754826, %v408
    %v415 = vshrl.u32 2131351028, %v409
    %v416 = vor.u32 %v414, %v415
    %v417 = vshll.u32 2131351028, %v408
    %v418 = vshrl.u32 2102212464, %v409
    %v419 = vor.u32 %v417, %v418
    %v420 = vshll.u32 2102212464, %v408
    %v421 = vshrl.u32 920167782, %v409
    %v422 = vor.u32 %v420, %v421
    %v423 = vshll.u32 920167782, %v408
    %v424 = vshrl.u32 1326507024, %v409
    %v425 = vor.u32 %v423, %v424
    %vm426 = vcmp.lt.s32.totalorder %v407, 1
    %vm427 = vcmp.lt.s32.totalorder %v407, 2
    %vm428 = vcmp.lt.s32.totalorder %v407, 3
    %vm429 = vcmp.lt.s32.totalorder %v407, 4
    %v430 = vsel %vm426, %v410, %v413
    %v431 = vsel %vm429, %v419, 2102212464
    %v432 = vsel %vm428, %v416, %v431
    %v433 = vsel %vm427, %v430, %v432
    %v434 = vsel %vm426, %v413, %v416
    %v435 = vsel %vm429, %v422, 920167782
    %v436 = vsel %vm428, %v419, %v435
    %v437 = vsel %vm427, %v434, %v436
    %v438 = vsel %vm426, %v416, %v419
    %v439 = vsel %vm429, %v425, 1326507024
    %v440 = vsel %vm428, %v422, %v439
    %v441 = vsel %vm427, %v438, %v440
    %v442 = vshll.u32 %v402, 8
    %v443 = vand.u32 %v442, 65535
    %v444 = vshrl.u32 %v442, 16
    %v445 = vand.u32 %v441, 65535
    %v446 = vshrl.u32 %v441, 16
    %v447 = vmul.u32 %v443, %v445
    %v448 = vmul.u32 %v443, %v446
    %v449 = vmul.u32 %v444, %v445
    %v450 = vmul.u32 %v444, %v446
    %v451 = vshll.u32 %v448, 16
    %v452 = vshrl.u32 %v448, 16
    %v453 = vshll.u32 %v449, 16
    %v454 = vshrl.u32 %v449, 16
    %vm455 = vc.u32 %v447, %v451
    %v456 = vsel %vm455, 1, 0
    %v457 = vadd.s32 %v447, %v451
    %v458 = vadd.s32 %v450, %v456
    %vm459 = vc.u32 %v457, %v453
    %v460 = vsel %vm459, 1, 0
    %v461 = vadd.s32 %v457, %v453
    %v462 = vadd.s32 %v458, %v460
    %v463 = vadd.s32 %v462, %v452
    %v464 = vadd.s32 %v463, %v454
    %v465 = vand.u32 %v442, 65535
    %v466 = vshrl.u32 %v442, 16
    %v467 = vand.u32 %v437, 65535
    %v468 = vshrl.u32 %v437, 16
    %v469 = vmul.u32 %v465, %v467
    %v470 = vmul.u32 %v465, %v468
    %v471 = vmul.u32 %v466, %v467
    %v472 = vmul.u32 %v466, %v468
    %v473 = vshll.u32 %v470, 16
    %v474 = vshrl.u32 %v470, 16
    %v475 = vshll.u32 %v471, 16
    %v476 = vshrl.u32 %v471, 16
    %vm477 = vc.u32 %v469, %v473
    %v478 = vsel %vm477, 1, 0
    %v479 = vadd.s32 %v469, %v473
    %v480 = vadd.s32 %v472, %v478
    %vm481 = vc.u32 %v479, %v475
    %v482 = vsel %vm481, 1, 0
    %v483 = vadd.s32 %v479, %v475
    %v484 = vadd.s32 %v480, %v482
    %v485 = vadd.s32 %v484, %v474
    %v486 = vadd.s32 %v485, %v476
    %v487 = vmul.u32 %v442, %v433
    %v488 = vadd.s32 %v464, %v483
    %vm489 = vc.u32 %v464, %v483
    %v490 = vadd.s32 %v486, 1
    %v491 = vsel %vm489, %v490, %v486
    %v492 = vadd.s32 %v487, %v491
    %v493 = vadd.s32 %v492, 536870912
    %v494 = vshrl.u32 %v493, 30
    %v495 = vshll.u32 %v494, 30
    %v496 = vsub.s32 %v492, %v495
    %vm497 = vcmp.lt.s32.totalorder %v496, 0
    %v498 = vsub.s32 0, %v496
    %v499 = vsel %vm497, %v498, %v496
    %v500 = vclz %v499
    %v501 = vsub.s32 %v500, 2
    %vm502 = vcmp.gt.s32.totalorder 0, %v501
    %v503 = vsel %vm502, 0, %v501
    %v504 = vsub.s32 32, %v503
    %v505 = vshll.u32 %v496, %v503
    %v506 = vshrl.u32 %v488, %v504
    %v507 = vor.u32 %v505, %v506
    %v508 = vsub.s32 4294967266, %v503
    %v509 = vadd.s32 %v508, 127
    %v510 = vshll.u32 %v509, 23
    %v511 = vor.u32 4788187, %v510
    %v512 = vand.u32 2147483647, %v511
    %v514 = vcvt.s32.f32 %v507
    %v515 = vmul.f32 %v514, %v512
    %v516 = vxor.u32 %v515, 2147483648
    %v517 = vsel %vm396, %v516, %v515
    %v518 = vsub.s32 4, %v494
    %v519 = vsel %vm396, %v518, %v494
    %v520 = vsel %vm395, %v82, %v517
    %v521 = vsel %vm395, 0, %v519
    %v522 = vmul.f32 %v520, %v520
    %v523 = vmul.f32 %v522, -0.001358992
    %v524 = vadd.f32 %v523, 0.041655596
    %v525 = vmul.f32 %v522, %v524
    %v526 = vadd.f32 %v525, -0.4999988
    %v527 = vmul.f32 %v522, %v526
    %v528 = vadd.f32 1.0, %v527
    %v529 = vmul.f32 %v520, %v520
    %v530 = vmul.f32 %v529, -0.00019511016
    %v531 = vadd.f32 %v530, 0.008332121
    %v532 = vmul.f32 %v529, %v531
    %v533 = vadd.f32 %v532, -0.16666654
    %v534 = vmul.f32 %v529, %v533
    %v535 = vadd.f32 %v534, 1.0
    %v536 = vmul.f32 %v535, %v520
    %vm537 = vweird.f32 %v82
    %v538 = vadd.s32 %v521, 3
    %v539 = vand.u32 %v538, 3
    %vm540 = vcmp.lt.s32.totalorder %v539, 2
    %vm541 = vcmp.eq.s32.totalorder %v539, 0
    %v542 = vxor.u32 %v536, 2147483648
    %v543 = vsel %vm541, %v528, %v542
    %vm544 = vcmp.eq.s32.totalorder %v539, 2
    %v545 = vxor.u32 %v528, 2147483648
    %v546 = vsel %vm544, %v545, %v536
    %v547 = vsel %vm540, %v543, %v546
    %v548 = vsel %vm537, nan, %v547
    %v549 = vand.u32 2147483647, %v83
    %vm550 = vcmp.le.f32.partialorder %v549, 0.7853982
    %vm551 = vcmp.lt.s32.totalorder %v83, 0
    %v552 = vand.u32 %v83, 2139095040
    %v553 = vshrl.u32 %v552, 23
    %v554 = vsub.s32 %v553, 127
    %v555 = vand.u32 2147483647, %v83
    %v556 = vand.u32 %v555, 8388607
    %v557 = vor.u32 %v556, 8388608
    %v558 = vsub.s32 0, %v557
    %v559 = vadd.s32 %v554, 1
    %vm560 = vcmp.gt.s32.totalorder %v559, 0
    %v561 = vsel %vm560, %v559, 0
    %v562 = vshrl.u32 %v561, 5
    %v563 = vand.u32 %v561, 31
    %v564 = vsub.s32 32, %v563
    %v565 = vshrl.u32 683565275, %v564
    %v566 = vshll.u32 683565275, %v563
    %v567 = vshrl.u32 2475754826, %v564
    %v568 = vor.u32 %v566, %v567
    %v569 = vshll.u32 2475754826, %v563
    %v570 = vshrl.u32 2131351028, %v564
    %v571 = vor.u32 %v569, %v570
    %v572 = vshll.u32 2131351028, %v563
    %v573 = vshrl.u32 2102212464, %v564
    %v574 = vor.u32 %v572, %v573
    %v575 = vshll.u32 2102212464, %v563
    %v576 = vshrl.u32 920167782, %v564
    %v577 = vor.u32 %v575, %v576
    %v578 = vshll.u32 920167782, %v563
    %v579 = vshrl.u32 1326507024, %v564
    %v580 = vor.u32 %v578, %v579
    %vm581 = vcmp.lt.s32.totalorder %v562, 1
    %vm582 = vcmp.lt.s32.totalorder %v562, 2
    %vm583 = vcmp.lt.s32.totalorder %v562, 3
    %vm584 = vcmp.lt.s32.totalorder %v562, 4
    %v585 = vsel %vm581, %v565, %v568
    %v586 = vsel %vm584, %v574, 2102212464
    %v587 = vsel %vm583, %v571, %v586
    %v588 = vsel %vm582, %v585, %v587
    %v589 = vsel %vm581, %v568, %v571
    %v590 = vsel %vm584, %v577, 920167782
    %v591 = vsel %vm583, %v574, %v590
    %v592 = vsel %vm582, %v589, %v591
    %v593 = vsel %vm581, %v571, %v574
    %v594 = vsel %vm584, %v580, 1326507024
    %v595 = vsel %vm583, %v577, %v594
    %v596 = vsel %vm582, %v593, %v595
    %v597 = vshll.u32 %v557, 8
    %v598 = vand.u32 %v597, 65535
    %v599 = vshrl.u32 %v597, 16
    %v600 = vand.u32 %v596, 65535
    %v601 = vshrl.u32 %v596, 16
    %v602 = vmul.u32 %v598, %v600
    %v603 = vmul.u32 %v598, %v601
    %v604 = vmul.u32 %v599, %v600
    %v605 = vmul.u32 %v599, %v601
    %v606 = vshll.u32 %v603, 16
    %v607 = vshrl.u32 %v603, 16
    %v608 = vshll.u32 %v604, 16
    %v609 = vshrl.u32 %v604, 16
    %vm610 = vc.u32 %v602, %v606
    %v611 = vsel %vm610, 1, 0
    %v612 = vadd.s32 %v602, %v606
    %v613 = vadd.s32 %v605, %v611
    %vm614 = vc.u32 %v612, %v608
    %v615 = vsel %vm614, 1, 0
    %v616 = vadd.s32 %v612, %v608
    %v617 = vadd.s32 %v613, %v615
    %v618 = vadd.s32 %v617, %v607
    %v619 = vadd.s32 %v618, %v609
    %v620 = vand.u32 %v597, 65535
    %v621 = vshrl.u32 %v597, 16
    %v622 = vand.u32 %v592, 65535
    %v623 = vshrl.u32 %v592, 16
    %v624 = vmul.u32 %v620, %v622
    %v625 = vmul.u32 %v620, %v623
    %v626 = vmul.u32 %v621, %v622
    %v627 = vmul.u32 %v621, %v623
    %v628 = vshll.u32 %v625, 16
    %v629 = vshrl.u32 %v625, 16
    %v630 = vshll.u32 %v626, 16
    %v631 = vshrl.u32 %v626, 16
    %vm632 = vc.u32 %v624, %v628
    %v633 = vsel %vm632, 1, 0
    %v634 = vadd.s32 %v624, %v628
    %v635 = vadd.s32 %v627, %v633
    %vm636 = vc.u32 %v634, %v630
    %v637 = vsel %vm636, 1, 0
    %v638 = vadd.s32 %v634, %v630
    %v639 = vadd.s32 %v635, %v637
    %v640 = vadd.s32 %v639, %v629
    %v641 = vadd.s32 %v640, %v631
    %v642 = vmul.u32 %v597, %v588
    %v643 = vadd.s32 %v619, %v638
    %vm644 = vc.u32 %v619, %v638
    %v645 = vadd.s32 %v641, 1
    %v646 = vsel %vm644, %v645, %v641
    %v647 = vadd.s32 %v642, %v646
    %v648 = vadd.s32 %v647, 536870912
    %v649 = vshrl.u32 %v648, 30
    %v650 = vshll.u32 %v649, 30
    %v651 = vsub.s32 %v647, %v650
    %vm652 = vcmp.lt.s32.totalorder %v651, 0
    %v653 = vsub.s32 0, %v651
    %v654 = vsel %vm652, %v653, %v651
    %v655 = vclz %v654
    %v656 = vsub.s32 %v655, 2
    %vm657 = vcmp.gt.s32.totalorder 0, %v656
    %v658 = vsel %vm657, 0, %v656
    %v659 = vsub.s32 32, %v658
    %v660 = vshll.u32 %v651, %v658
    %v661 = vshrl.u32 %v643, %v659
    %v662 = vor.u32 %v660, %v661
    %v663 = vsub.s32 4294967266, %v658
    %v664 = vadd.s32 %v663, 127
    %v665 = vshll.u32 %v664, 23
    %v666 = vor.u32 4788187, %v665
    %v667 = vand.u32 2147483647, %v666
    %v669 = vcvt.s32.f32 %v662
    %v670 = vmul.f32 %v669, %v667
    %v671 = vxor.u32 %v670, 2147483648
    %v672 = vsel %vm551, %v671, %v670
    %v673 = vsub.s32 4, %v649
    %v674 = vsel %vm551, %v673, %v649
    %v675 = vsel %vm550, %v83, %v672
    %v676 = vsel %vm550, 0, %v674
    %v677 = vmul.f32 %v675, %v675
    %v678 = vmul.f32 %v677, -0.001358992
    %v679 = vadd.f32 %v678, 0.041655596
    %v680 = vmul.f32 %v677, %v679
    %v681 = vadd.f32 %v680, -0.4999988
    %v682 = vmul.f32 %v677, %v681
    %v683 = vadd.f32 1.0, %v682
    %v684 = vmul.f32 %v675, %v675
    %v685 = vmul.f32 %v684, -0.00019511016
    %v686 = vadd.f32 %v685, 0.008332121
    %v687 = vmul.f32 %v684, %v686
    %v688 = vadd.f32 %v687, -0.16666654
    %v689 = vmul.f32 %v684, %v688
    %v690 = vadd.f32 %v689, 1.0
    %v691 = vmul.f32 %v690, %v675
    %vm692 = vweird.f32 %v83
    %v693 = vadd.s32 %v676, 3
    %v694 = vand.u32 %v693, 3
    %vm695 = vcmp.lt.s32.totalorder %v694, 2
    %vm696 = vcmp.eq.s32.totalorder %v694, 0
    %v697 = vxor.u32 %v691, 2147483648
    %v698 = vsel %vm696, %v683, %v697
    %vm699 = vcmp.eq.s32.totalorder %v694, 2
    %v700 = vxor.u32 %v683, 2147483648
    %v701 = vsel %vm699, %v700, %v691
    %v702 = vsel %vm695, %v698, %v701
    %v703 = vsel %vm692, nan, %v702
    %v704 = vld [vmem:[%s3] sm:$0x3]
    %v705 = vld [vmem:[%s4] sm:$0x3]
    %707 = vset.pattern.permute.xlu0 0
    %708 = vperm.xlu0 %707, %v705
    %v709 = vpop.permute.xlu0 %708
    %v711 = vmul.f32 %v709, %v50
    %vm712 = vcmask 261120
    %v714 = vsel %vm712, %v704, 0
    %716 = vmatpush.msra.mxu0 0.0
    %717 = vmatpush.msra.mxu0 0.0
    %718 = vmatpush.msra.mxu0 0.0
    %719 = vmatpush.msra.mxu0 0.0
    %720 = vmatpush.msra.mxu0 0.0
    %721 = vmatpush.msra.mxu0 0.0
    %722 = vmatpush.msra.mxu0 0.0
    %723 = vmatpush.msra.mxu0 0.0
    %724 = vmatpush.msra.mxu0 0.0
    %725 = vmatpush.msra.mxu0 0.0
    %726 = vmatpush.msra.mxu0 0.0
    %727 = vmatpush.msra.mxu0 0.0
    %728 = vmatpush.msra.mxu0 %v703
    %729 = vmatpush.msra.mxu0 %v548
    %730 = vmatpush.msra.mxu0 %v393
    %731 = vmatpush.msra.mxu0 %v238
    %732 = vmatmul.f32.gmra.mxu0 %v714
    %v733 = vpop.f32.mrf.mxu0
    %v734 = vadd.f32 %v711, %v733
    %735 = vdwg.mxu0
    %v736 = vld [vmem:[%s5] sm:$0x3]
    %738 = vset.pattern.permute.xlu0 0
    %739 = vperm.xlu0 %738, %v736
    %v740 = vpop.permute.xlu0 %739
    %v742 = vadd.f32 %v734, %v740
    %743 = vst [vmem:[#allocation2] sm:$0x3] %v742
    // Predicated region
    $region26: #{tpu_custom_call.1} parent=1 // pred_check
      _
    $region27: #{tpu_custom_call.1} parent=1 // pred_check_branch
      %745 = sbr.rel (0) target = $region29
    $region28: #{tpu_custom_call.1} parent=1 // pred_region
      %747 = vsyncadd [#allocation3], 0
      %s749 = sshll.u32 [#allocation2], 4
      %s750 = int_to_ptr.vmem [resolvable:$true] %s749
      %s751 = sshll.u32 %s6, 4
      %s752 = int_to_ptr.hbm [resolvable:$true] %s751
      %754 = dma.vmem_to_hbm [thread:$0]  %s750, 32, %s752, [#allocation3]
    $region29: #{tpu_custom_call.1} parent=1 // pred_fallthru
      _
    // Predicated region
    $region30: #{tpu_custom_call.1} parent=1 // pred_check
      _
    $region31: #{tpu_custom_call.1} parent=1 // pred_check_branch
      %756 = sbr.rel (0) target = $region33
    $region32: #{tpu_custom_call.1} parent=1 // pred_region
      %758 = dma.done [#allocation3], 32
    $region33: #{tpu_custom_call.1} parent=1 // pred_fallthru
      _
    %759 = vsyncpa [#allocation3], 1

</llo_original>
